<compile_context>
chip_gen: v6e
topology: v6e:2x2x1
jax: 0.10.0
libtpu: 0.0.40
codegen_flags: <defaults>
</compile_context>

<pallas_src>
import functools

import jax
import jax.numpy as jnp
from jax import lax
from jax.experimental import pallas as pl
from jax.experimental.pallas import tpu as pltpu


# ---------------------------- helpers ----------------------------

def _round_up(x, m):
    return ((x + m - 1) // m) * m


def _compiler_params(dims, bytes_per_step):
    # Double-buffered pipelining keeps ~2 grid-steps of blocks resident in VMEM;
    # clamp the scoped limit so it is safe on v5e/v6e (128 MiB physical) and on
    # v7x (64 MiB physical) while still lifting the small default scoped limit.
    limit = int(max(16 * 1024 * 1024, min(48 * 1024 * 1024, 4 * bytes_per_step)))
    return pltpu.CompilerParams(dimension_semantics=dims, vmem_limit_bytes=limit)


# ---------------------------- Pallas kernels ----------------------------

def _mask_kernel(lab_row_ref, lab_col_ref, mask_ref):
    """mask[i, j] = (labels[i] != labels[j])  for one (TM, TC) output tile."""
    li = lab_row_ref[...]                                  # (TM, 1) int32
    lj = lab_col_ref[...]                                  # (1, TC) int32
    mask_ref[...] = (li != lj).astype(mask_ref.dtype)      # int8 0/1, full tile store


def _cosine_sim_kernel(x_ref, y_ref, out_ref, *, inv_temp):
    """Row-wise cosine similarity / temp for a (1, TN, D) block; lane-dense output."""
    x = x_ref[...].astype(jnp.float32)                     # (1, TN, D)
    y = y_ref[...].astype(jnp.float32)
    dot = jnp.sum(x * y, axis=-1)                          # (1, TN)
    sx = jnp.sum(x * x, axis=-1)
    sy = jnp.sum(y * y, axis=-1)
    # cos = dot / max(||x||*||y||, 1e-6)  ==  dot * rsqrt(max(sx*sy, 1e-12))
    inv_den = lax.rsqrt(jnp.maximum(sx * sy, 1e-12))       # EUP rsqrt, not sqrt+div
    out = dot * inv_den * inv_temp                         # 1/temp folded at trace time
    out_ref[...] = out.reshape(out_ref.shape).astype(out_ref.dtype)   # (1, 1, TN)


# ---------------------------- Wrappers ----------------------------

def pairwise_not_equal_mask(labels, block_rows=512, block_cols=1024):
    """[L] int labels -> [L, L] int8 mask (1 iff labels differ, i.e. ~same-label).

    Kept int8 (0/1) end-to-end: an `.astype(bool)` would re-read and re-write the
    full L x L array in HBM for zero semantic value (both dtypes are 1 byte).
    """
    L = labels.shape[0]
    lab = labels.astype(jnp.int32)

    # Tiles: either a large aligned tile (mult. of 8 / 128) or the full padded dim.
    TM = min(int(block_rows), _round_up(L, 8))
    TC = min(int(block_cols), _round_up(L, 128))
    LR = _round_up(L, TM)
    LC = _round_up(L, TC)

    lab_row = jnp.pad(lab, (0, LR - L)).reshape(LR, 1)
    lab_col = jnp.pad(lab, (0, LC - L)).reshape(1, LC)

    bytes_per_step = TM * 4 + TC * 4 + TM * TC              # labels + int8 output tile
    mask = pl.pallas_call(
        _mask_kernel,
        out_shape=jax.ShapeDtypeStruct((LR, LC), jnp.int8),
        grid=(LR // TM, LC // TC),
        in_specs=[
            pl.BlockSpec((TM, 1), lambda i, j: (i, 0)),
            pl.BlockSpec((1, TC), lambda i, j: (0, j)),
        ],
        out_specs=pl.BlockSpec((TM, TC), lambda i, j: (i, j)),
        compiler_params=_compiler_params(("parallel", "parallel"), bytes_per_step),
    )(lab_row, lab_col)
    return mask[:L, :L]


def similarity(x, y, temp, block_rows=512):
    """Similarity module: cosine(x, y, dim=-1) / temp for [N, D] inputs -> [N] f32."""
    assert x.shape == y.shape and x.ndim == 2
    N, D = x.shape

    # Row tile: multiple of 8 sublanes; capped so 2 inputs x 2 pipeline buffers fit
    # comfortably in the smallest (v7x, 64 MiB) VMEM even for large D.
    TN = min(int(block_rows), _round_up(N, 8))
    N_pad = _round_up(N, TN)
    G = N_pad // TN
    if N_pad != N:
        pad = ((0, N_pad - N), (0, 0))
        x = jnp.pad(x, pad)
        y = jnp.pad(y, pad)
    x3 = x.reshape(G, TN, D)
    y3 = y.reshape(G, TN, D)

    bytes_per_step = 2 * TN * D * x.dtype.itemsize + TN * 4
    out = pl.pallas_call(
        functools.partial(_cosine_sim_kernel, inv_temp=1.0 / float(temp)),
        out_shape=jax.ShapeDtypeStruct((G, 1, TN), jnp.float32),   # lane-dense output
        grid=(G,),
        in_specs=[
            pl.BlockSpec((1, TN, D), lambda i: (i, 0, 0)),
            pl.BlockSpec((1, TN, D), lambda i: (i, 0, 0)),
        ],
        out_specs=pl.BlockSpec((1, 1, TN), lambda i: (i, 0, 0)),
        compiler_params=_compiler_params(("parallel",), bytes_per_step),
    )(x3, y3)
    return out.reshape(N_pad)[:N]


def conversation_loss_forward(feats, labels, temp=0.05):
    """Mirror of ConversationLoss.forward: slice feats[:length] + build the
    negated same-label mask (the only compute the reference forward performs)."""
    length = labels.shape[0]
    feats = feats[:length]
    mask = pairwise_not_equal_mask(labels)
    # TODO(synk): the reference forward() returns None (the InfoNCE loss body is
    # unimplemented upstream). We return the sliced feats + int8 mask so the
    # kernel outputs can be verified; once a real loss body exists, fuse the
    # labels[i]!=labels[j] compare into that kernel instead of materializing LxL.
    return feats, mask


# ---------------------------- Demo / check ----------------------------

if __name__ == "__main__":
    key = jax.random.PRNGKey(0)
    k1, k2 = jax.random.split(key)

    # Small shapes; N > L exercises the feats[:length] slice, L=10 exercises the
    # tile-padding paths (rows pad to 16, mask cols pad to 128).
    N, D, L = 12, 32, 10
    feats = jax.random.normal(k1, (N, D), dtype=jnp.float32)
    labels = jnp.array([0, 1, 0, 2, 1, 3, 2, 0, 3, 1], dtype=jnp.int32)
    temp = 0.05

    feats_sliced, mask = conversation_loss_forward(feats, labels, temp=temp)
    mask = jax.block_until_ready(mask)

    # reference check for the mask (int8 0/1 vs. boolean reference)
    ref_mask = labels[:, None] != labels[None, :]
    assert mask.shape == (L, L) and mask.dtype == jnp.int8
    assert bool(jnp.all((mask != 0) == ref_mask))
    assert feats_sliced.shape == (L, D)

    # exercise the Similarity kernel (cosine / temp) against a pure-JAX reference
    other = jax.random.normal(k2, (L, D), dtype=jnp.float32)
    sim = jax.block_until_ready(similarity(feats_sliced, other, temp))
    dot = jnp.sum(feats_sliced * other, axis=-1)
    ref_sim = dot / jnp.maximum(
        jnp.linalg.norm(feats_sliced, axis=-1) * jnp.linalg.norm(other, axis=-1), 1e-6
    ) / temp
    assert bool(jnp.allclose(sim, ref_sim, atol=2e-3, rtol=2e-3))

    print("KERNEL_OK")
</pallas_src>

<mosaic_0001>
module attributes {stable_mosaic.version = 11 : i64} {
  func.func @_mask_kernel(%arg0: i32, %arg1: i32, %arg2: memref<16x1xi32, #tpu.memory_space<vmem>>, %arg3: memref<1x128xi32, #tpu.memory_space<vmem>>, %arg4: memref<16x128xi8, #tpu.memory_space<vmem>>) attributes {dimension_semantics = [#tpu.dimension_semantics<parallel>, #tpu.dimension_semantics<parallel>], iteration_bounds = array<i64: 1, 1>, scalar_prefetch = 0 : i64, scratch_operands = 0 : i64, tpu.core_type = #tpu.core_type<tc>, window_params = [{transform_indices = @transform_0, window_bounds = array<i64: 16, 1>}, {transform_indices = @transform_1, window_bounds = array<i64: 1, 128>}, {transform_indices = @transform_2, window_bounds = array<i64: 16, 128>}]} {
    %c0 = arith.constant 0 : index
    %c0_0 = arith.constant 0 : index
    %0 = vector.load %arg2[%c0, %c0_0] : memref<16x1xi32, #tpu.memory_space<vmem>>, vector<16x1xi32>
    %c0_1 = arith.constant 0 : index
    %c0_2 = arith.constant 0 : index
    %1 = vector.load %arg3[%c0_1, %c0_2] : memref<1x128xi32, #tpu.memory_space<vmem>>, vector<1x128xi32>
    %2 = vector.broadcast %0 : vector<16x1xi32> to vector<16x128xi32>
    %3 = vector.broadcast %1 : vector<1x128xi32> to vector<16x128xi32>
    %4 = arith.cmpi ne, %2, %3 : vector<16x128xi32>
    %5 = arith.extui %4 : vector<16x128xi1> to vector<16x128xi8>
    %c0_3 = arith.constant 0 : index
    %c0_4 = arith.constant 0 : index
    %6 = vector.load %arg4[%c0_3, %c0_4] : memref<16x128xi8, #tpu.memory_space<vmem>>, vector<16x128xi8>
    tpu.vector_store %arg4[%c0_3, %c0_4], %5 {strides = array<i32>} : memref<16x128xi8, #tpu.memory_space<vmem>>, vector<16x128xi8>,
    return
  }
  func.func @transform_0(%arg0: i32, %arg1: i32) -> (i32, i32) {
    %c0_i32 = arith.constant 0 : i32
    %c0_i32_0 = arith.constant 0 : i32
    return %arg0, %c0_i32 : i32, i32
  }
  func.func @transform_1(%arg0: i32, %arg1: i32) -> (i32, i32) {
    %c0_i32 = arith.constant 0 : i32
    %c0_i32_0 = arith.constant 0 : i32
    return %c0_i32, %arg1 : i32, i32
  }
  func.func @transform_2(%arg0: i32, %arg1: i32) -> (i32, i32) {
    %c0_i32 = arith.constant 0 : i32
    return %arg0, %arg1 : i32, i32
  }
}

</mosaic_0001>

<llo_original>
// kernel: tpu_custom_call.1
$region0: #{tpu_custom_call.1}
  #allocation0 [shape = 'u32[]', space=smem, size = 0x4, offset = 0x4, fixed_abs, tag = 'smem constant byte address 0x4 - core index']
  #allocation1 [shape = 'u32[144,128]{1,0:T(1,128)}', space=vmem, size = 0x12000, scoped, tag = 'internal scratch']
  %s0 = inlined_call_operand.vmem [shape: s32[16,1], index: 0, kind: input, shape index: {}]
  %s1 = inlined_call_operand.vmem [shape: s32[1,128], index: 1, kind: input, shape index: {}]
  %s2 = inlined_call_operand.hbm [shape: s8[16,128], index: 2, kind: output, shape index: {}]
  %s3 = sld [smem:[#allocation0]]
  $region18: #{tpu_custom_call.1} parent=0
    _
  %s5 = ssub.s32 1, %s3
  %s6 = scalar_select 0, %s5, %s3
  $region1: #{tpu_custom_call.1} parent=0
    #allocation2 [shape = 'u8[2048]{0}', space=vmem, size = 0x800, scoped, tag = 'output window, operand 0, single buffered']
    #allocation3 [shape = 's32[1]{0}', space=sflag, size = 0x4, scoped, tag = 'scoped memory for tpu_custom_call.1']
    %7 = vsyncpa [#allocation3], 0
    // Predicated region
    $region2: #{tpu_custom_call.1} parent=1 // pred_check
      _
    $region3: #{tpu_custom_call.1} parent=1 // pred_check_branch
      %9 = sbr.rel (0) target = $region5
    $region4: #{tpu_custom_call.1} parent=1 // pred_region
      _
    $region5: #{tpu_custom_call.1} parent=1 // pred_fallthru
      _
    // Predicated region
    $region6: #{tpu_custom_call.1} parent=1 // pred_check
      _
    $region7: #{tpu_custom_call.1} parent=1 // pred_check_branch
      %11 = sbr.rel (0) target = $region9
    $region8: #{tpu_custom_call.1} parent=1 // pred_region
      _
    $region9: #{tpu_custom_call.1} parent=1 // pred_fallthru
      _
    %v14 = vld [vmem:[%s0] sm:$0xff]
    %v15 = vld [vmem:[%s0 + $0x8] sm:$0xff]
    %v16 = vld [vmem:[%s1] sm:$0x1]
    %17 = vset.pattern.permute.xlu0 0
    %18 = vperm.xlu0 %17, %v14
    %v19 = vpop.permute.xlu0 %18
    %20 = vset.pattern.permute.xlu0 0
    %21 = vperm.xlu0 %20, %v15
    %v22 = vpop.permute.xlu0 %21
    %v23 = vlaneseq
    %v24 = vshrl.u32 %v23, 7
    %v25 = vsub.s32 0, %v24
    %v26 = vrot.slane %v16, %v25
    %vm27 = vcmp.ne.s32.totalorder %v19, %v26
    %vm28 = vcmp.ne.s32.totalorder %v22, %v26
    %vm29 = vmpackc.low %vm28, %vm27
    %vm30 = vmpackc.even %vm29, %vm29
    %v31 = vsel %vm30, 16843009, 0
    %v32 = vunpack.c.0.s8 %v31
    %v33 = vunpack.c.1.s8 %v31
    %v34 = vpack.c.b16 %v32, %v32
    %v35 = vpack.c.b8 %v34, %v34
    %v36 = vpack.c.b16 %v33, %v33
    %v37 = vpack.c.b8 %v36, %v36
    %38 = vst [vmem:[#allocation2] sm:$0x3] %v35
    %39 = vst [vmem:[#allocation2 + $0x2] sm:$0x3] %v37
    // Predicated region
    $region10: #{tpu_custom_call.1} parent=1 // pred_check
      _
    $region11: #{tpu_custom_call.1} parent=1 // pred_check_branch
      %41 = sbr.rel (0) target = $region13
    $region12: #{tpu_custom_call.1} parent=1 // pred_region
      %s43 = ssub.s32 64, 64
      %44 = vsyncadd [#allocation3], %s43
      %s45 = sshll.u32 [#allocation2], 4
      %s46 = int_to_ptr.vmem [resolvable:$true] %s45
      %51 = dma.vmem_to_hbm [thread:$0]  %s46, 64, %s2, [#allocation3], 32, 32, 2
    $region13: #{tpu_custom_call.1} parent=1 // pred_fallthru
      _
    // Predicated region
    $region14: #{tpu_custom_call.1} parent=1 // pred_check
      _
    $region15: #{tpu_custom_call.1} parent=1 // pred_check_branch
      %53 = sbr.rel (0) target = $region17
    $region16: #{tpu_custom_call.1} parent=1 // pred_region
      %54 = dma.done [#allocation3], 64
    $region17: #{tpu_custom_call.1} parent=1 // pred_fallthru
      _
    %55 = vsyncpa [#allocation3], 1

</llo_original>
